<compile_context>
chip_gen: v5e
topology: v5e:2x2
jax: 0.10.0
libtpu: 0.0.40
codegen_flags: <defaults>
</compile_context>

<pallas_src>
import jax
import jax.numpy as jnp
from jax import lax
from jax.experimental import pallas as pl
from jax.experimental.pallas import tpu as pltpu


def _linear_gather_kernel(ind_ref, x_ref, w_ref, o_ref):
    """One grid step handles one batch b with all E experts fused.

    ind_ref: (1, E, K, 1) int32 VMEM  -- gather indices into T
    x_ref:   (1, T, I)    f32   VMEM
    w_ref:   (E, I, J)    f32   VMEM  -- pre-transposed weight, shared across b
    o_ref:   (1, K, E*J)  f32   VMEM  -- lane-dense output slab (un-permuted in wrapper)
    """
    x = x_ref[0]                       # (T, I)
    T = x.shape[0]
    E = w_ref.shape[0]
    K = o_ref.shape[1]

    outs = []
    for e in range(E):                 # static unroll; E is small and trace-time known
        idx = ind_ref[0, e]            # (K, 1) int32
        # Gather-on-MXU: one-hot (K, T) selects the K requested rows of X.
        onehot = (idx == lax.broadcasted_iota(jnp.int32, (K, T), 1)).astype(x.dtype)
        xg = jnp.dot(onehot, x, preferred_element_type=jnp.float32)            # (K, I)
        outs.append(jnp.dot(xg, w_ref[e], preferred_element_type=jnp.float32))  # (K, J)

    # Single lane-dense store of the whole (K, E*J) slab for this batch.
    o_ref[0] = jnp.concatenate(outs, axis=-1)


def linear_gather(X, W, ind):
    """X: (B,T,I) f32, W: (E*J, I) f32 (torch Linear weight), ind: (B,E,K) int
    returns (B, E, K, J) f32 matching TorchLinearGather.forward."""
    B, T, I = X.shape
    Bi, E, K = ind.shape
    assert Bi == B
    EJ, Iw = W.shape
    assert Iw == I and EJ % E == 0
    J = EJ // E

    # Layout plumbing in XLA (free): expert-major, pre-transposed weight so the
    # kernel never needs an in-kernel transpose.
    W_t = jnp.transpose(W.reshape(E, J, I), (0, 2, 1))        # (E, I, J)
    ind4 = ind.astype(jnp.int32).reshape(B, E, K, 1)

    # NOTE: on v6e/v7x one could cast X / W_t to bfloat16 here (keeping f32
    # accumulation via preferred_element_type) for ~2x MXU throughput and half
    # the DMA bytes; kept f32 so the result matches the f32 reference to 1e-5.
    slab = pl.pallas_call(
        _linear_gather_kernel,
        out_shape=jax.ShapeDtypeStruct((B, K, E * J), jnp.float32),
        grid=(B,),
        in_specs=[
            pl.BlockSpec((1, E, K, 1), lambda b: (b, 0, 0, 0)),   # indices
            pl.BlockSpec((1, T, I), lambda b: (b, 0, 0)),          # activations
            pl.BlockSpec((E, I, J), lambda b: (0, 0, 0)),          # weights (resident)
        ],
        out_specs=pl.BlockSpec((1, K, E * J), lambda b: (b, 0, 0)),
        compiler_params=pltpu.CompilerParams(
            dimension_semantics=("parallel",),   # shards batches across v7x's 2 TCs
        ),
    )(ind4, X, W_t)

    # (B, K, E*J) -> (B, K, E, J) -> (B, E, K, J)   (XLA-side un-permute, cheap)
    return jnp.transpose(slab.reshape(B, K, E, J), (0, 2, 1, 3))


def linear_gather_ref(X, W, ind):
    B, T, I = X.shape
    _, E, K = ind.shape
    J = W.shape[0] // E
    Y = jnp.einsum("bti,oi->bto", X, W).reshape(B, T, E, J)    # (B,T,E,J)
    Y = jnp.transpose(Y, (0, 2, 1, 3))                         # (B,E,T,J)
    return jnp.take_along_axis(Y, ind[..., None], axis=2)      # (B,E,K,J)


if __name__ == "__main__":
    key = jax.random.PRNGKey(0)
    kx, kw, ki = jax.random.split(key, 3)

    B, T, I = 2, 16, 32
    E, J, K = 4, 8, 5

    X = jax.random.normal(kx, (B, T, I), dtype=jnp.float32)
    # torch.nn.Linear(I, E*J, bias=False) weight shape: (E*J, I)
    W = (jax.random.normal(kw, (E * J, I), dtype=jnp.float32)
         * (1.0 / jnp.sqrt(I)))
    ind = jax.random.randint(ki, (B, E, K), 0, T, dtype=jnp.int32)

    out = linear_gather(X, W, ind)
    out = jax.block_until_ready(out)

    ref = linear_gather_ref(X, W, ind)
    assert out.shape == (B, E, K, J)
    assert jnp.allclose(out, ref, atol=1e-5, rtol=1e-5)
    print("KERNEL_OK")
</pallas_src>

<mosaic_0001>
module attributes {stable_mosaic.version = 11 : i64} {
  func.func @_linear_gather_kernel(%arg0: i32, %arg1: memref<1x4x5x1xi32, #tpu.memory_space<vmem>>, %arg2: memref<1x16x32xf32, #tpu.memory_space<vmem>>, %arg3: memref<4x32x8xf32, #tpu.memory_space<vmem>>, %arg4: memref<1x5x32xf32, #tpu.memory_space<vmem>>) attributes {dimension_semantics = [#tpu.dimension_semantics<parallel>], iteration_bounds = array<i64: 2>, scalar_prefetch = 0 : i64, scratch_operands = 0 : i64, tpu.core_type = #tpu.core_type<tc>, window_params = [{transform_indices = @transform_0, window_bounds = array<i64: 1, 4, 5, 1>}, {transform_indices = @transform_1, window_bounds = array<i64: 1, 16, 32>}, {pipeline_mode = #tpu.pipeline_mode<synchronous>, transform_indices = @transform_2, window_bounds = array<i64: 4, 32, 8>}, {transform_indices = @transform_3, window_bounds = array<i64: 1, 5, 32>}]} {
    %c0 = arith.constant 0 : index
    %c0_0 = arith.constant 0 : index
    %c0_1 = arith.constant 0 : index
    %0 = vector.load %arg2[%c0, %c0_0, %c0_1] : memref<1x16x32xf32, #tpu.memory_space<vmem>>, vector<1x16x32xf32>
    %1 = vector.shape_cast %0 : vector<1x16x32xf32> to vector<16x32xf32>
    %c0_2 = arith.constant 0 : index
    %c0_3 = arith.constant 0 : index
    %c0_4 = arith.constant 0 : index
    %c0_5 = arith.constant 0 : index
    %2 = vector.load %arg1[%c0_2, %c0_3, %c0_4, %c0_5] : memref<1x4x5x1xi32, #tpu.memory_space<vmem>>, vector<1x1x5x1xi32>
    %3 = vector.shape_cast %2 : vector<1x1x5x1xi32> to vector<5x1xi32>
    %4 = tpu.iota {dimensions = array<i32: 1>} : vector<5x16xi32>
    %5 = vector.broadcast %3 : vector<5x1xi32> to vector<5x16xi32>
    %6 = arith.cmpi eq, %5, %4 : vector<5x16xi32>
    %7 = arith.extui %6 : vector<5x16xi1> to vector<5x16xi32>
    %8 = arith.sitofp %7 : vector<5x16xi32> to vector<5x16xf32>
    %cst = arith.constant dense<0.000000e+00> : vector<5x32xf32>
    %9 = tpu.matmul %8, %1, %cst {dimension_numbers = #tpu.dot_dimension_numbers<[1], [0], [0], [1], [0, 0, 1, 1], [], []>} : vector<5x16xf32>, vector<16x32xf32>, vector<5x32xf32> -> vector<5x32xf32>
    %c0_6 = arith.constant 0 : index
    %c0_7 = arith.constant 0 : index
    %c0_8 = arith.constant 0 : index
    %10 = vector.load %arg3[%c0_6, %c0_7, %c0_8] : memref<4x32x8xf32, #tpu.memory_space<vmem>>, vector<1x32x8xf32>
    %11 = vector.shape_cast %10 : vector<1x32x8xf32> to vector<32x8xf32>
    %cst_9 = arith.constant dense<0.000000e+00> : vector<5x8xf32>
    %12 = tpu.matmul %9, %11, %cst_9 {dimension_numbers = #tpu.dot_dimension_numbers<[1], [0], [0], [1], [0, 0, 1, 1], [], []>} : vector<5x32xf32>, vector<32x8xf32>, vector<5x8xf32> -> vector<5x8xf32>
    %c0_10 = arith.constant 0 : index
    %c1 = arith.constant 1 : index
    %c0_11 = arith.constant 0 : index
    %c0_12 = arith.constant 0 : index
    %13 = vector.load %arg1[%c0_10, %c1, %c0_11, %c0_12] : memref<1x4x5x1xi32, #tpu.memory_space<vmem>>, vector<1x1x5x1xi32>
    %14 = vector.shape_cast %13 : vector<1x1x5x1xi32> to vector<5x1xi32>
    %15 = tpu.iota {dimensions = array<i32: 1>} : vector<5x16xi32>
    %16 = vector.broadcast %14 : vector<5x1xi32> to vector<5x16xi32>
    %17 = arith.cmpi eq, %16, %15 : vector<5x16xi32>
    %18 = arith.extui %17 : vector<5x16xi1> to vector<5x16xi32>
    %19 = arith.sitofp %18 : vector<5x16xi32> to vector<5x16xf32>
    %cst_13 = arith.constant dense<0.000000e+00> : vector<5x32xf32>
    %20 = tpu.matmul %19, %1, %cst_13 {dimension_numbers = #tpu.dot_dimension_numbers<[1], [0], [0], [1], [0, 0, 1, 1], [], []>} : vector<5x16xf32>, vector<16x32xf32>, vector<5x32xf32> -> vector<5x32xf32>
    %c1_14 = arith.constant 1 : index
    %c0_15 = arith.constant 0 : index
    %c0_16 = arith.constant 0 : index
    %21 = vector.load %arg3[%c1_14, %c0_15, %c0_16] : memref<4x32x8xf32, #tpu.memory_space<vmem>>, vector<1x32x8xf32>
    %22 = vector.shape_cast %21 : vector<1x32x8xf32> to vector<32x8xf32>
    %cst_17 = arith.constant dense<0.000000e+00> : vector<5x8xf32>
    %23 = tpu.matmul %20, %22, %cst_17 {dimension_numbers = #tpu.dot_dimension_numbers<[1], [0], [0], [1], [0, 0, 1, 1], [], []>} : vector<5x32xf32>, vector<32x8xf32>, vector<5x8xf32> -> vector<5x8xf32>
    %c0_18 = arith.constant 0 : index
    %c2 = arith.constant 2 : index
    %c0_19 = arith.constant 0 : index
    %c0_20 = arith.constant 0 : index
    %24 = vector.load %arg1[%c0_18, %c2, %c0_19, %c0_20] : memref<1x4x5x1xi32, #tpu.memory_space<vmem>>, vector<1x1x5x1xi32>
    %25 = vector.shape_cast %24 : vector<1x1x5x1xi32> to vector<5x1xi32>
    %26 = tpu.iota {dimensions = array<i32: 1>} : vector<5x16xi32>
    %27 = vector.broadcast %25 : vector<5x1xi32> to vector<5x16xi32>
    %28 = arith.cmpi eq, %27, %26 : vector<5x16xi32>
    %29 = arith.extui %28 : vector<5x16xi1> to vector<5x16xi32>
    %30 = arith.sitofp %29 : vector<5x16xi32> to vector<5x16xf32>
    %cst_21 = arith.constant dense<0.000000e+00> : vector<5x32xf32>
    %31 = tpu.matmul %30, %1, %cst_21 {dimension_numbers = #tpu.dot_dimension_numbers<[1], [0], [0], [1], [0, 0, 1, 1], [], []>} : vector<5x16xf32>, vector<16x32xf32>, vector<5x32xf32> -> vector<5x32xf32>
    %c2_22 = arith.constant 2 : index
    %c0_23 = arith.constant 0 : index
    %c0_24 = arith.constant 0 : index
    %32 = vector.load %arg3[%c2_22, %c0_23, %c0_24] : memref<4x32x8xf32, #tpu.memory_space<vmem>>, vector<1x32x8xf32>
    %33 = vector.shape_cast %32 : vector<1x32x8xf32> to vector<32x8xf32>
    %cst_25 = arith.constant dense<0.000000e+00> : vector<5x8xf32>
    %34 = tpu.matmul %31, %33, %cst_25 {dimension_numbers = #tpu.dot_dimension_numbers<[1], [0], [0], [1], [0, 0, 1, 1], [], []>} : vector<5x32xf32>, vector<32x8xf32>, vector<5x8xf32> -> vector<5x8xf32>
    %c0_26 = arith.constant 0 : index
    %c3 = arith.constant 3 : index
    %c0_27 = arith.constant 0 : index
    %c0_28 = arith.constant 0 : index
    %35 = vector.load %arg1[%c0_26, %c3, %c0_27, %c0_28] : memref<1x4x5x1xi32, #tpu.memory_space<vmem>>, vector<1x1x5x1xi32>
    %36 = vector.shape_cast %35 : vector<1x1x5x1xi32> to vector<5x1xi32>
    %37 = tpu.iota {dimensions = array<i32: 1>} : vector<5x16xi32>
    %38 = vector.broadcast %36 : vector<5x1xi32> to vector<5x16xi32>
    %39 = arith.cmpi eq, %38, %37 : vector<5x16xi32>
    %40 = arith.extui %39 : vector<5x16xi1> to vector<5x16xi32>
    %41 = arith.sitofp %40 : vector<5x16xi32> to vector<5x16xf32>
    %cst_29 = arith.constant dense<0.000000e+00> : vector<5x32xf32>
    %42 = tpu.matmul %41, %1, %cst_29 {dimension_numbers = #tpu.dot_dimension_numbers<[1], [0], [0], [1], [0, 0, 1, 1], [], []>} : vector<5x16xf32>, vector<16x32xf32>, vector<5x32xf32> -> vector<5x32xf32>
    %c3_30 = arith.constant 3 : index
    %c0_31 = arith.constant 0 : index
    %c0_32 = arith.constant 0 : index
    %43 = vector.load %arg3[%c3_30, %c0_31, %c0_32] : memref<4x32x8xf32, #tpu.memory_space<vmem>>, vector<1x32x8xf32>
    %44 = vector.shape_cast %43 : vector<1x32x8xf32> to vector<32x8xf32>
    %cst_33 = arith.constant dense<0.000000e+00> : vector<5x8xf32>
    %45 = tpu.matmul %42, %44, %cst_33 {dimension_numbers = #tpu.dot_dimension_numbers<[1], [0], [0], [1], [0, 0, 1, 1], [], []>} : vector<5x32xf32>, vector<32x8xf32>, vector<5x8xf32> -> vector<5x8xf32>
    %46 = tpu.concatenate %12, %23, %34, %45 in 1 : vector<5x8xf32>, vector<5x8xf32>, vector<5x8xf32>, vector<5x8xf32> -> vector<5x32xf32>
    %c0_34 = arith.constant 0 : index
    %c0_35 = arith.constant 0 : index
    %c0_36 = arith.constant 0 : index
    %47 = vector.load %arg4[%c0_34, %c0_35, %c0_36] : memref<1x5x32xf32, #tpu.memory_space<vmem>>, vector<1x5x32xf32>
    %48 = vector.shape_cast %47 : vector<1x5x32xf32> to vector<5x32xf32>
    %49 = vector.shape_cast %46 : vector<5x32xf32> to vector<1x5x32xf32>
    tpu.vector_store %arg4[%c0_34, %c0_35, %c0_36], %49 {strides = array<i32>} : memref<1x5x32xf32, #tpu.memory_space<vmem>>, vector<1x5x32xf32>,
    return
  }
  func.func @transform_0(%arg0: i32) -> (i32, i32, i32, i32) {
    %c0_i32 = arith.constant 0 : i32
    %c0_i32_0 = arith.constant 0 : i32
    %c0_i32_1 = arith.constant 0 : i32
    %c0_i32_2 = arith.constant 0 : i32
    return %arg0, %c0_i32, %c0_i32_0, %c0_i32_1 : i32, i32, i32, i32
  }
  func.func @transform_1(%arg0: i32) -> (i32, i32, i32) {
    %c0_i32 = arith.constant 0 : i32
    %c0_i32_0 = arith.constant 0 : i32
    %c0_i32_1 = arith.constant 0 : i32
    return %arg0, %c0_i32, %c0_i32_0 : i32, i32, i32
  }
  func.func @transform_2(%arg0: i32) -> (i32, i32, i32) {
    %c0_i32 = arith.constant 0 : i32
    %c0_i32_0 = arith.constant 0 : i32
    %c0_i32_1 = arith.constant 0 : i32
    %c0_i32_2 = arith.constant 0 : i32
    return %c0_i32, %c0_i32_0, %c0_i32_1 : i32, i32, i32
  }
  func.func @transform_3(%arg0: i32) -> (i32, i32, i32) {
    %c0_i32 = arith.constant 0 : i32
    %c0_i32_0 = arith.constant 0 : i32
    %c0_i32_1 = arith.constant 0 : i32
    return %arg0, %c0_i32, %c0_i32_0 : i32, i32, i32
  }
}

</mosaic_0001>

<llo_original>
// kernel: tpu_custom_call.1
$region0: #{tpu_custom_call.1}
  #allocation0 [shape = 'u32[]', space=smem, size = 0x4, offset = 0x4, fixed_abs, tag = 'smem constant byte address 0x4 - core index']
  #allocation1 [shape = 'u32[72,128]{1,0:T(1,128)}', space=vmem, size = 0x9000, scoped, tag = 'internal scratch']
  %s0 = inlined_call_operand.vmem [shape: s32[2,4,5,1], index: 0, kind: input, shape index: {}]
  %s1 = inlined_call_operand.vmem [shape: f32[2,16,32], index: 1, kind: input, shape index: {}]
  %s2 = inlined_call_operand.vmem [shape: f32[4,32,8], index: 2, kind: input, shape index: {}]
  %s3 = inlined_call_operand.vmem [shape: f32[2,5,32], index: 3, kind: output, shape index: {}]
  %s4 = sld [smem:[#allocation0]]
  $region45: #{tpu_custom_call.1} parent=0
    _
  %s6 = ssub.s32 1, %s4
  %s7 = scalar_select 0, %s6, %s4
  loop: start=0, step=1, limit=4
  $region2: #{tpu_custom_call.1} parent=0 // loop_pre_header
    _
  $region3: #{tpu_custom_call.1} parent=0 // loop_header
    %s9 = sphi 0, %s13
    %p10 = scmp.ge.s32.totalorder %s9, 4
    %s19 = sphi 0, %s21
    %s22 = sphi 0, %s19
    %s23 = sphi 0, %s22
    %s39 = sphi 0, %s23
    %s45 = sphi 0, %s47
    %s48 = sphi 0, %s45
    %s49 = sphi 0, %s48
    %s65 = sphi 0, %s49
    %s69 = sphi 0, %s69
    %s71 = sphi 0, %s69
    %s72 = sphi 0, %s71
    %s86 = sphi 0, %s72
    %s92 = sphi 0, %s94
    %s95 = sphi 0, %s92
    %s96 = sphi 0, %s95
    %s112 = sphi 0, %s96
  $region4: #{tpu_custom_call.1} parent=0 // loop_header_branch
    %12 = sbr.rel (%p10) target = $region8
  $region5: #{tpu_custom_call.1} parent=0 // loop_body
    %s14 = ssub.s32 %s9, 1
    %s15 = ssub.s32 %s9, 2
    %s16 = sadd.s32 %s9, 1
    %s17 = ssub.s32 %s9, %s16
    %p18 = scmp.eq.s32.totalorder %s17, 0
    %s20 = sadd.s32 %s19, 1
    %s21 = scalar_select %p18, %s19, %s20
    %p24 = pneg %p18
    %p25 = scmp.eq.s32.totalorder %s9, 1
    %p26 = por %p24, %p25
    %p27 = scmp.ne.s32.totalorder %s19, %s22
    %p28 = scmp.eq.s32.totalorder %s9, 0
    %p29 = por %p27, %p28
    %p30 = scmp.ne.s32.totalorder %s19, %s22
    %p31 = scmp.eq.s32.totalorder %s14, 1
    %p32 = por %p30, %p31
    %p33 = scmp.ne.s32.totalorder %s22, %s23
    %p34 = scmp.eq.s32.totalorder %s14, 0
    %p35 = por %p33, %p34
    %p36 = scmp.ne.s32.totalorder %s22, %s23
    %p37 = scmp.eq.s32.totalorder %s15, 1
    %p38 = por %p36, %p37
    %p40 = scmp.ne.s32.totalorder %s23, %s39
    %p41 = scmp.eq.s32.totalorder %s15, 0
    %p42 = por %p40, %p41
    %s43 = ssub.s32 %s9, %s16
    %p44 = scmp.eq.s32.totalorder %s43, 0
    %s46 = sadd.s32 %s45, 1
    %s47 = scalar_select %p44, %s45, %s46
    %p50 = pneg %p44
    %p51 = scmp.eq.s32.totalorder %s9, 1
    %p52 = por %p50, %p51
    %p53 = scmp.ne.s32.totalorder %s45, %s48
    %p54 = scmp.eq.s32.totalorder %s9, 0
    %p55 = por %p53, %p54
    %p56 = scmp.ne.s32.totalorder %s45, %s48
    %p57 = scmp.eq.s32.totalorder %s14, 1
    %p58 = por %p56, %p57
    %p59 = scmp.ne.s32.totalorder %s48, %s49
    %p60 = scmp.eq.s32.totalorder %s14, 0
    %p61 = por %p59, %p60
    %p62 = scmp.ne.s32.totalorder %s48, %s49
    %p63 = scmp.eq.s32.totalorder %s15, 1
    %p64 = por %p62, %p63
    %p66 = scmp.ne.s32.totalorder %s49, %s65
    %p67 = scmp.eq.s32.totalorder %s15, 0
    %p68 = por %p66, %p67
    %s70 = sadd.s32 %s69, 1
    %p73 = scmp.eq.s32.totalorder %s9, 1
    %p74 = scmp.ne.s32.totalorder %s69, %s71
    %p75 = scmp.eq.s32.totalorder %s9, 0
    %p76 = por %p74, %p75
    %p77 = scmp.ne.s32.totalorder %s69, %s71
    %p78 = scmp.eq.s32.totalorder %s14, 1
    %p79 = por %p77, %p78
    %p80 = scmp.ne.s32.totalorder %s71, %s72
    %p81 = scmp.eq.s32.totalorder %s14, 0
    %p82 = por %p80, %p81
    %p83 = scmp.ne.s32.totalorder %s71, %s72
    %p84 = scmp.eq.s32.totalorder %s15, 1
    %p85 = por %p83, %p84
    %p87 = scmp.ne.s32.totalorder %s72, %s86
    %p88 = scmp.eq.s32.totalorder %s15, 0
    %p89 = por %p87, %p88
    %s90 = ssub.s32 %s9, %s16
    %p91 = scmp.eq.s32.totalorder %s90, 0
    %s93 = sadd.s32 %s92, 1
    %s94 = scalar_select %p91, %s92, %s93
    %p97 = pneg %p91
    %p98 = scmp.eq.s32.totalorder %s9, 1
    %p99 = por %p97, %p98
    %p100 = scmp.ne.s32.totalorder %s92, %s95
    %p101 = scmp.eq.s32.totalorder %s9, 0
    %p102 = por %p100, %p101
    %p103 = scmp.ne.s32.totalorder %s92, %s95
    %p104 = scmp.eq.s32.totalorder %s14, 1
    %p105 = por %p103, %p104
    %p106 = scmp.ne.s32.totalorder %s95, %s96
    %p107 = scmp.eq.s32.totalorder %s14, 0
    %p108 = por %p106, %p107
    %p109 = scmp.ne.s32.totalorder %s95, %s96
    %p110 = scmp.eq.s32.totalorder %s15, 1
    %p111 = por %p109, %p110
    %p113 = scmp.ne.s32.totalorder %s96, %s112
    %p114 = scmp.eq.s32.totalorder %s15, 0
    %p115 = por %p113, %p114
    %p116 = scmp.le.s32.totalorder 1, %s9
    %p117 = scmp.lt.s32.totalorder %s9, 3
    %p118 = pnand %p116, %p117
    %p119 = pneg %p118
    // Predicated region
    $region9: #{tpu_custom_call.1} parent=5 // pred_check
      _
    $region10: #{tpu_custom_call.1} parent=5 // pred_check_branch
      %121 = sbr.rel (%p118) target = $region12
    $region11: #{tpu_custom_call.1} parent=5 // pred_region
      %s122 = ssub.s32 %s9, 1
      // Predicated region
      $region13: #{tpu_custom_call.1} parent=11 // pred_check
        %p123 = pneg %p82
      $region14: #{tpu_custom_call.1} parent=11 // pred_check_branch
        %125 = sbr.rel (%p123) target = $region16
      $region15: #{tpu_custom_call.1} parent=11 // pred_region
        _
      $region16: #{tpu_custom_call.1} parent=11 // pred_fallthru
        _
    $region12: #{tpu_custom_call.1} parent=5 // pred_fallthru
      _
    %p126 = scmp.lt.s32.totalorder %s9, 2
    // Predicated region
    $region17: #{tpu_custom_call.1} parent=5 // pred_check
      %p127 = pneg %p126
    $region18: #{tpu_custom_call.1} parent=5 // pred_check_branch
      %129 = sbr.rel (%p127) target = $region20
    $region19: #{tpu_custom_call.1} parent=5 // pred_region
      // Predicated region
      $region21: #{tpu_custom_call.1} parent=19 // pred_check
        %p130 = pneg %p29
      $region22: #{tpu_custom_call.1} parent=19 // pred_check_branch
        %132 = sbr.rel (%p130) target = $region24
      $region23: #{tpu_custom_call.1} parent=19 // pred_region
        %p133 = scmp.lt.s32.totalorder %s9, 1
        %s134 = scalar_select %p133, %s9, 1
        %s135 = smul.addr %s134, 4
        %s136 = smul.addr %s135, 8
        %s137 = scalar_lea.vmem %s0, %s136
      $region24: #{tpu_custom_call.1} parent=19 // pred_fallthru
        _
      // Predicated region
      $region25: #{tpu_custom_call.1} parent=19 // pred_check
        %p138 = pneg %p55
      $region26: #{tpu_custom_call.1} parent=19 // pred_check_branch
        %140 = sbr.rel (%p138) target = $region28
      $region27: #{tpu_custom_call.1} parent=19 // pred_region
        %p141 = scmp.lt.s32.totalorder %s9, 1
        %s142 = scalar_select %p141, %s9, 1
        %s143 = smul.addr %s142, 2
        %s144 = smul.addr %s143, 8
        %s145 = scalar_lea.vmem %s1, %s144
      $region28: #{tpu_custom_call.1} parent=19 // pred_fallthru
        _
    $region20: #{tpu_custom_call.1} parent=5 // pred_fallthru
      _
    %p146 = scmp.le.s32.totalorder 1, %s9
    %p147 = scmp.lt.s32.totalorder %s9, 3
    %p148 = pnand %p146, %p147
    %p149 = pneg %p148
    // Predicated region
    $region29: #{tpu_custom_call.1} parent=5 // pred_check
      _
    $region30: #{tpu_custom_call.1} parent=5 // pred_check_branch
      %151 = sbr.rel (%p148) target = $region32
    $region31: #{tpu_custom_call.1} parent=5 // pred_region
      %s152 = ssub.s32 %s9, 1
      %p153 = scmp.lt.s32.totalorder %s14, 1
      %s154 = scalar_select %p153, %s14, 1
      %s155 = smul.addr %s154, 4
      %s156 = smul.addr %s155, 8
      %s157 = scalar_lea.vmem %s0, %s156
      %p158 = pneg %p35
      %p159 = pneg %p32
      %p160 = scmp.lt.s32.totalorder %s14, 1
      %s161 = scalar_select %p160, %s14, 1
      %s162 = smul.addr %s161, 2
      %s163 = smul.addr %s162, 8
      %s164 = scalar_lea.vmem %s1, %s163
      %p165 = pneg %p61
      %p166 = pneg %p58
      %p167 = pneg %p82
      %p168 = pneg %p79
      %p169 = pneg %p108
      %p170 = pneg %p105
      %p171 = scmp.lt.s32.totalorder %s14, 1
      %s172 = scalar_select %p171, %s14, 1
      %s173 = smul.addr %s172, 8
      %s174 = scalar_lea.vmem %s3, %s173
      %p175 = scmp.lt.s32.totalorder %s14, 1
      %s176 = scalar_select %p175, %s14, 1
      %s177 = smul.addr %s176, 4
      %s178 = smul.addr %s177, 8
      %s179 = scalar_lea.vmem %s0, %s178
      %p180 = scmp.lt.s32.totalorder %s14, 1
      %s181 = scalar_select %p180, %s14, 1
      %s182 = smul.addr %s181, 2
      %s183 = smul.addr %s182, 8
      %s184 = scalar_lea.vmem %s1, %s183
      %p185 = scmp.lt.s32.totalorder %s14, 1
      %s186 = scalar_select %p185, %s14, 1
      %s187 = smul.addr %s186, 8
      %s188 = scalar_lea.vmem %s3, %s187
      %v189 = vld [vmem:[%s184] sm:$0xff]
      %v190 = vld [vmem:[%s184 + $0x8] sm:$0xff]
      %v191 = vld [vmem:[%s179] sm:$0x1f]
      %v192 = vlaneseq
      %v193 = vand.u32 %v192, 127
      %194 = vset.pattern.permute.xlu0 0
      %195 = vperm.xlu0 %194, %v191
      %v196 = vpop.permute.xlu0 %195
      %vm197 = vcmp.eq.s32.totalorder %v196, %v193
      %v198 = vsel %vm197, 1, 0
      %v199 = vcvt.s32.f32 %v198
      %vm200 = vcmask 130048
      %v202 = vsel %vm200, %v199, 0
      %204 = vmatpush.msra.mxu0 0.0
      %205 = vmatpush.msra.mxu0 0.0
      %206 = vmatpush.msra.mxu0 0.0
      %207 = vmatpush.msra.mxu0 0.0
      %208 = vmatpush.msra.mxu0 0.0
      %209 = vmatpush.msra.mxu0 0.0
      %210 = vmatpush.msra.mxu0 0.0
      %211 = vmatpush.msra.mxu0 0.0
      %212 = vmatpush.msra.mxu0 0.0
      %213 = vmatpush.msra.mxu0 0.0
      %214 = vmatpush.msra.mxu0 0.0
      %215 = vmatpush.msra.mxu0 0.0
      %216 = vmatpush.msra.mxu0 0.0
      %217 = vmatpush.msra.mxu0 0.0
      %218 = vmatpush.msra.mxu0 %v190
      %219 = vmatpush.msra.mxu0 %v189
      %220 = vmatmul.f32.gmra.mxu0 %v202
      %v221 = vpop.f32.mrf.mxu0
      %v222 = vadd.f32 0.0, %v221
      %223 = vdwg.mxu0
      %v224 = vld [vmem:[%s2] sm:$0xff]
      %v225 = vld [vmem:[%s2 + $0x8] sm:$0xff]
      %v226 = vld [vmem:[%s2 + $0x10] sm:$0xff]
      %v227 = vld [vmem:[%s2 + $0x18] sm:$0xff]
      %vm228 = vcmask 261120
      %v230 = vsel %vm228, %v222, 0
      %232 = vmatpush.msra.mxu0 0.0
      %233 = vmatpush.msra.mxu0 0.0
      %234 = vmatpush.msra.mxu0 0.0
      %235 = vmatpush.msra.mxu0 0.0
      %236 = vmatpush.msra.mxu0 0.0
      %237 = vmatpush.msra.mxu0 0.0
      %238 = vmatpush.msra.mxu0 0.0
      %239 = vmatpush.msra.mxu0 0.0
      %240 = vmatpush.msra.mxu0 0.0
      %241 = vmatpush.msra.mxu0 0.0
      %242 = vmatpush.msra.mxu0 0.0
      %243 = vmatpush.msra.mxu0 0.0
      %244 = vmatpush.msra.mxu0 %v227
      %245 = vmatpush.msra.mxu0 %v226
      %246 = vmatpush.msra.mxu0 %v225
      %247 = vmatpush.msra.mxu0 %v224
      %248 = vmatmul.f32.gmra.mxu0 %v230
      %v249 = vpop.f32.mrf.mxu0
      %v250 = vadd.f32 0.0, %v249
      %251 = vdwg.mxu0
      %s252 = scalar_lea.vmem %s179, 8
      %v253 = vld [vmem:[%s252] sm:$0x1f]
      %254 = vset.pattern.permute.xlu0 0
      %255 = vperm.xlu0 %254, %v253
      %v256 = vpop.permute.xlu0 %255
      %vm257 = vcmp.eq.s32.totalorder %v256, %v193
      %v258 = vsel %vm257, 1, 0
      %v259 = vcvt.s32.f32 %v258
      %v261 = vsel %vm200, %v259, 0
      %263 = vmatpush.msra.mxu0 0.0
      %264 = vmatpush.msra.mxu0 0.0
      %265 = vmatpush.msra.mxu0 0.0
      %266 = vmatpush.msra.mxu0 0.0
      %267 = vmatpush.msra.mxu0 0.0
      %268 = vmatpush.msra.mxu0 0.0
      %269 = vmatpush.msra.mxu0 0.0
      %270 = vmatpush.msra.mxu0 0.0
      %271 = vmatpush.msra.mxu0 0.0
      %272 = vmatpush.msra.mxu0 0.0
      %273 = vmatpush.msra.mxu0 0.0
      %274 = vmatpush.msra.mxu0 0.0
      %275 = vmatpush.msra.mxu0 0.0
      %276 = vmatpush.msra.mxu0 0.0
      %277 = vmatpush.msra.mxu0 %v190
      %278 = vmatpush.msra.mxu0 %v189
      %279 = vmatmul.f32.gmra.mxu0 %v261
      %v280 = vpop.f32.mrf.mxu0
      %v281 = vadd.f32 0.0, %v280
      %282 = vdwg.mxu0
      %s283 = scalar_lea.vmem %s2, 32
      %v284 = vld [vmem:[%s283] sm:$0xff]
      %v285 = vld [vmem:[%s283 + $0x8] sm:$0xff]
      %v286 = vld [vmem:[%s283 + $0x10] sm:$0xff]
      %v287 = vld [vmem:[%s283 + $0x18] sm:$0xff]
      %v289 = vsel %vm228, %v281, 0
      %291 = vmatpush.msra.mxu0 0.0
      %292 = vmatpush.msra.mxu0 0.0
      %293 = vmatpush.msra.mxu0 0.0
      %294 = vmatpush.msra.mxu0 0.0
      %295 = vmatpush.msra.mxu0 0.0
      %296 = vmatpush.msra.mxu0 0.0
      %297 = vmatpush.msra.mxu0 0.0
      %298 = vmatpush.msra.mxu0 0.0
      %299 = vmatpush.msra.mxu0 0.0
      %300 = vmatpush.msra.mxu0 0.0
      %301 = vmatpush.msra.mxu0 0.0
      %302 = vmatpush.msra.mxu0 0.0
      %303 = vmatpush.msra.mxu0 %v287
      %304 = vmatpush.msra.mxu0 %v286
      %305 = vmatpush.msra.mxu0 %v285
      %306 = vmatpush.msra.mxu0 %v284
      %307 = vmatmul.f32.gmra.mxu0 %v289
      %v308 = vpop.f32.mrf.mxu0
      %v309 = vadd.f32 0.0, %v308
      %310 = vdwg.mxu0
      %s311 = scalar_lea.vmem %s179, 16
      %v312 = vld [vmem:[%s311] sm:$0x1f]
      %313 = vset.pattern.permute.xlu0 0
      %314 = vperm.xlu0 %313, %v312
      %v315 = vpop.permute.xlu0 %314
      %vm316 = vcmp.eq.s32.totalorder %v315, %v193
      %v317 = vsel %vm316, 1, 0
      %v318 = vcvt.s32.f32 %v317
      %v320 = vsel %vm200, %v318, 0
      %322 = vmatpush.msra.mxu0 0.0
      %323 = vmatpush.msra.mxu0 0.0
      %324 = vmatpush.msra.mxu0 0.0
      %325 = vmatpush.msra.mxu0 0.0
      %326 = vmatpush.msra.mxu0 0.0
      %327 = vmatpush.msra.mxu0 0.0
      %328 = vmatpush.msra.mxu0 0.0
      %329 = vmatpush.msra.mxu0 0.0
      %330 = vmatpush.msra.mxu0 0.0
      %331 = vmatpush.msra.mxu0 0.0
      %332 = vmatpush.msra.mxu0 0.0
      %333 = vmatpush.msra.mxu0 0.0
      %334 = vmatpush.msra.mxu0 0.0
      %335 = vmatpush.msra.mxu0 0.0
      %336 = vmatpush.msra.mxu0 %v190
      %337 = vmatpush.msra.mxu0 %v189
      %338 = vmatmul.f32.gmra.mxu0 %v320
      %v339 = vpop.f32.mrf.mxu0
      %v340 = vadd.f32 0.0, %v339
      %341 = vdwg.mxu0
      %s342 = scalar_lea.vmem %s2, 64
      %v343 = vld [vmem:[%s342] sm:$0xff]
      %v344 = vld [vmem:[%s342 + $0x8] sm:$0xff]
      %v345 = vld [vmem:[%s342 + $0x10] sm:$0xff]
      %v346 = vld [vmem:[%s342 + $0x18] sm:$0xff]
      %v348 = vsel %vm228, %v340, 0
      %350 = vmatpush.msra.mxu0 0.0
      %351 = vmatpush.msra.mxu0 0.0
      %352 = vmatpush.msra.mxu0 0.0
      %353 = vmatpush.msra.mxu0 0.0
      %354 = vmatpush.msra.mxu0 0.0
      %355 = vmatpush.msra.mxu0 0.0
      %356 = vmatpush.msra.mxu0 0.0
      %357 = vmatpush.msra.mxu0 0.0
      %358 = vmatpush.msra.mxu0 0.0
      %359 = vmatpush.msra.mxu0 0.0
      %360 = vmatpush.msra.mxu0 0.0
      %361 = vmatpush.msra.mxu0 0.0
      %362 = vmatpush.msra.mxu0 %v346
      %363 = vmatpush.msra.mxu0 %v345
      %364 = vmatpush.msra.mxu0 %v344
      %365 = vmatpush.msra.mxu0 %v343
      %366 = vmatmul.f32.gmra.mxu0 %v348
      %v367 = vpop.f32.mrf.mxu0
      %v368 = vadd.f32 0.0, %v367
      %369 = vdwg.mxu0
      %s370 = scalar_lea.vmem %s179, 24
      %v371 = vld [vmem:[%s370] sm:$0x1f]
      %372 = vset.pattern.permute.xlu0 0
      %373 = vperm.xlu0 %372, %v371
      %v374 = vpop.permute.xlu0 %373
      %vm375 = vcmp.eq.s32.totalorder %v374, %v193
      %v376 = vsel %vm375, 1, 0
      %v377 = vcvt.s32.f32 %v376
      %v379 = vsel %vm200, %v377, 0
      %381 = vmatpush.msra.mxu0 0.0
      %382 = vmatpush.msra.mxu0 0.0
      %383 = vmatpush.msra.mxu0 0.0
      %384 = vmatpush.msra.mxu0 0.0
      %385 = vmatpush.msra.mxu0 0.0
      %386 = vmatpush.msra.mxu0 0.0
      %387 = vmatpush.msra.mxu0 0.0
      %388 = vmatpush.msra.mxu0 0.0
      %389 = vmatpush.msra.mxu0 0.0
      %390 = vmatpush.msra.mxu0 0.0
      %391 = vmatpush.msra.mxu0 0.0
      %392 = vmatpush.msra.mxu0 0.0
      %393 = vmatpush.msra.mxu0 0.0
      %394 = vmatpush.msra.mxu0 0.0
      %395 = vmatpush.msra.mxu0 %v190
      %396 = vmatpush.msra.mxu0 %v189
      %397 = vmatmul.f32.gmra.mxu0 %v379
      %v398 = vpop.f32.mrf.mxu0
      %v399 = vadd.f32 0.0, %v398
      %400 = vdwg.mxu0
      %s401 = scalar_lea.vmem %s2, 96
      %v402 = vld [vmem:[%s401] sm:$0xff]
      %v403 = vld [vmem:[%s401 + $0x8] sm:$0xff]
      %v404 = vld [vmem:[%s401 + $0x10] sm:$0xff]
      %v405 = vld [vmem:[%s401 + $0x18] sm:$0xff]
      %v407 = vsel %vm228, %v399, 0
      %409 = vmatpush.msra.mxu0 0.0
      %410 = vmatpush.msra.mxu0 0.0
      %411 = vmatpush.msra.mxu0 0.0
      %412 = vmatpush.msra.mxu0 0.0
      %413 = vmatpush.msra.mxu0 0.0
      %414 = vmatpush.msra.mxu0 0.0
      %415 = vmatpush.msra.mxu0 0.0
      %416 = vmatpush.msra.mxu0 0.0
      %417 = vmatpush.msra.mxu0 0.0
      %418 = vmatpush.msra.mxu0 0.0
      %419 = vmatpush.msra.mxu0 0.0
      %420 = vmatpush.msra.mxu0 0.0
      %421 = vmatpush.msra.mxu0 %v405
      %422 = vmatpush.msra.mxu0 %v404
      %423 = vmatpush.msra.mxu0 %v403
      %424 = vmatpush.msra.mxu0 %v402
      %425 = vmatmul.f32.gmra.mxu0 %v407
      %v426 = vpop.f32.mrf.mxu0
      %v427 = vadd.f32 0.0, %v426
      %428 = vdwg.mxu0
      %430 = vrot.lane.b32.xlu0 %v309, 8
      %v431 = vpop.permute.xlu0 %430
      %434 = vrot.lane.b32.xlu0 %v368, 16
      %v435 = vpop.permute.xlu0 %434
      %438 = vrot.lane.b32.xlu0 %v427, 24
      %v439 = vpop.permute.xlu0 %438
      %vm441 = vcmask 64512
      %v442 = vsel %vm441, %v250, %v431
      %v443 = vsel %vm200, %v442, %v435
      %vm444 = vcmask 195584
      %v445 = vsel %vm444, %v443, %v439
      %vm446 = vcmask 258048
      %447 = vst.msk [vmem:[%s188] sm:$0x1f] %vm446, %v445
      %p448 = scmp.lt.s32.totalorder %s14, 1
      %s449 = scalar_select %p448, %s14, 1
      %s450 = smul.addr %s449, 8
      %s451 = scalar_lea.vmem %s3, %s450
      // Predicated region
      $region33: #{tpu_custom_call.1} parent=31 // pred_check
        %p452 = pneg %p105
      $region34: #{tpu_custom_call.1} parent=31 // pred_check_branch
        %454 = sbr.rel (%p452) target = $region36
      $region35: #{tpu_custom_call.1} parent=31 // pred_region
        _
      $region36: #{tpu_custom_call.1} parent=31 // pred_fallthru
        _
    $region32: #{tpu_custom_call.1} parent=5 // pred_fallthru
      _
    %p455 = scmp.le.s32.totalorder 2, %s9
    // Predicated region
    $region37: #{tpu_custom_call.1} parent=5 // pred_check
      %p456 = pneg %p455
    $region38: #{tpu_custom_call.1} parent=5 // pred_check_branch
      %458 = sbr.rel (%p456) target = $region40
    $region39: #{tpu_custom_call.1} parent=5 // pred_region
      %s459 = ssub.s32 %s9, 2
      // Predicated region
      $region41: #{tpu_custom_call.1} parent=39 // pred_check
        %p460 = pneg %p111
      $region42: #{tpu_custom_call.1} parent=39 // pred_check_branch
        %462 = sbr.rel (%p460) target = $region44
      $region43: #{tpu_custom_call.1} parent=39 // pred_region
        %p463 = scmp.lt.s32.totalorder %s15, 1
        %s464 = scalar_select %p463, %s15, 1
        %s465 = smul.addr %s464, 8
        %s466 = scalar_lea.vmem %s3, %s465
      $region44: #{tpu_custom_call.1} parent=39 // pred_fallthru
        _
    $region40: #{tpu_custom_call.1} parent=5 // pred_fallthru
      _
  $region6: #{tpu_custom_call.1} parent=0 // loop_footer
    %s13 = sadd.s32 1, %s9
  $region7: #{tpu_custom_call.1} parent=0 // loop_footer_branch
    %8 = sbr.rel target = $region3
  $region8: #{tpu_custom_call.1} parent=0 // loop_exit
    _

</llo_original>
